<compile_context>
chip_gen: v7x
topology: tpu7x:2x2x1
jax: 0.10.0
libtpu: 0.0.40
codegen_flags: <defaults>
</compile_context>

<pallas_src>
from functools import partial

import jax
import jax.numpy as jnp
from jax.experimental import pallas as pl
from jax.experimental.pallas import tpu as pltpu


def agreement_router_kernel(x_ref, bias_ref, out_ref, *, num_routing: int,
                            out_capsules: int):
    # x_ref:    (TB, I, O, F) block — TB batch elements
    # bias_ref: (1, I, O, 1)  full bias (broadcast-ready layout)
    # out_ref:  (TB, O, F)    block of the output
    x = x_ref[...].astype(jnp.float32)                      # (TB, I, O, F)
    bias4 = bias_ref[...].astype(jnp.float32)               # (1,  I, O, 1)
    inv_o = jnp.float32(1.0 / out_capsules)

    # --- routing round 0: priors == 0 -> softmax over O is uniform (1/O) ---
    s = jnp.sum(x, axis=1, keepdims=True) * inv_o           # (TB, 1, O, F)

    if num_routing > 1:
        # Loop-invariant pieces of the priors update:
        #   priors += sum_F(x * (s + bias)) = sum_F(x * s) + bias * sum_F(x)
        xF = jnp.sum(x, axis=-1, keepdims=True)              # (TB, I, O, 1)
        bxF = bias4 * xF                                     # (TB, I, O, 1)

        priors = jnp.sum(x * s, axis=-1, keepdims=True) + bxF  # (TB, I, O, 1)

        for i in range(1, num_routing):
            # softmax over out_capsules (axis=2) on the compact (TB, I, O, 1) priors
            m = jnp.max(priors, axis=2, keepdims=True)        # (TB, I, 1, 1)
            e = jnp.exp(priors - m)                           # (TB, I, O, 1)
            denom = jnp.sum(e, axis=2, keepdims=True)         # (TB, I, 1, 1)
            r = pl.reciprocal(denom, approx=True)             # EUP slot
            r = r * (2.0 - denom * r)                         # 1 Newton step -> f32-accurate
            agreements = e * r                                # (TB, I, O, 1)

            # weighted sum over in_capsules (broadcast of agreements along F lanes)
            s = jnp.sum(x * agreements, axis=1, keepdims=True)   # (TB, 1, O, F)

            if i < num_routing - 1:
                priors = priors + jnp.sum(x * s, axis=-1, keepdims=True) + bxF

    # torch: outputs[:, 0] == s + bias[0]  (bias[0] broadcast over features)
    out_ref[...] = (s[:, 0] + bias4[:, 0]).astype(out_ref.dtype)


def _pick_batch_tile(B, I, O, F, itemsize, vmem_budget_bytes):
    """Largest divisor TB of B whose double-buffered tiles fit the budget,
    preferring >= 2 grid steps (so the parallel batch axis can use both v7x cores)."""
    def tile_bytes(tb):
        x_tile = tb * I * O * F * itemsize
        out_tile = tb * O * F * itemsize
        return 2 * (x_tile + out_tile)          # double-buffered input + output

    divisors = [d for d in range(1, B + 1) if B % d == 0]
    fitting = [d for d in divisors if tile_bytes(d) <= vmem_budget_bytes] or [1]
    multi = [d for d in fitting if B // d >= 2]
    return max(multi) if multi else max(fitting)


def agreement_router(x, bias, num_routing: int = 3):
    """x: (B, I, O, F) float32, bias: (I, O, 1) float32 -> (B, O, F) float32."""
    B, I, O, F = x.shape
    num_routing = num_routing if num_routing > 0 else 1

    itemsize = jnp.dtype(x.dtype).itemsize
    TB = _pick_batch_tile(B, I, O, F, itemsize, vmem_budget_bytes=8 * 1024 * 1024)
    G = B // TB

    # Pre-shape bias once (wrapper-side, free in XLA) to a broadcast-ready layout.
    bias4 = bias.reshape(1, I, O, 1).astype(x.dtype)

    kernel = partial(agreement_router_kernel, num_routing=num_routing,
                     out_capsules=O)

    return pl.pallas_call(
        kernel,
        out_shape=jax.ShapeDtypeStruct((B, O, F), x.dtype),
        grid_spec=pltpu.PrefetchScalarGridSpec(
            num_scalar_prefetch=0,
            grid=(G,),
            in_specs=[
                pl.BlockSpec((TB, I, O, F), lambda g: (g, 0, 0, 0)),
                pl.BlockSpec((1, I, O, 1), lambda g: (0, 0, 0, 0)),
            ],
            out_specs=pl.BlockSpec((TB, O, F), lambda g: (g, 0, 0)),
        ),
        compiler_params=pltpu.CompilerParams(
            dimension_semantics=("parallel",),
            vmem_limit_bytes=32 * 1024 * 1024,
        ),
    )(x, bias4)


def agreement_router_ref(x, bias, num_routing: int = 3):
    """Pure-JAX reference mirroring the PyTorch forward exactly."""
    num_routing = num_routing if num_routing > 0 else 1
    priors = jnp.zeros_like(x)                               # (B, I, O, F)
    outputs = None
    for i in range(num_routing):
        agreements = jax.nn.softmax(priors, axis=2)          # dim=2
        outputs = jnp.sum(x * agreements, axis=1, keepdims=True)  # (B, 1, O, F)
        outputs = outputs + bias                             # -> (B, I, O, F)
        # activation = Identity
        if i < num_routing - 1:
            priors = priors + jnp.sum(x * outputs, axis=-1, keepdims=True)
    return outputs[:, 0]                                     # (B, O, F)


if __name__ == "__main__":
    B, I, O, F = 4, 4, 8, 32        # batch, in_capsules, out_capsules, num_features
    NUM_ROUTING = 3

    key = jax.random.PRNGKey(0)
    kx, kb = jax.random.split(key)
    x = jax.random.normal(kx, (B, I, O, F), dtype=jnp.float32)
    # Module's reset_parameters() zeroes the bias; use a small deterministic nonzero
    # bias here so the broadcast / hoisted-bias path is actually exercised.
    bias = 0.1 * jax.random.normal(kb, (I, O, 1), dtype=jnp.float32)

    out = agreement_router(x, bias, NUM_ROUTING)
    out = jax.block_until_ready(out)

    ref = agreement_router_ref(x, bias, NUM_ROUTING)
    assert out.shape == (B, O, F)
    assert jnp.allclose(out, ref, atol=1e-4, rtol=1e-4), "mismatch vs reference"

    print("KERNEL_OK")
</pallas_src>

<mosaic_0001>
module attributes {stable_mosaic.version = 11 : i64} {
  func.func @agreement_router_kernel(%arg0: i32, %arg1: memref<2x4x8x32xf32, #tpu.memory_space<vmem>>, %arg2: memref<1x4x8x1xf32, #tpu.memory_space<vmem>>, %arg3: memref<2x8x32xf32, #tpu.memory_space<vmem>>) attributes {dimension_semantics = [#tpu.dimension_semantics<parallel>], iteration_bounds = array<i64: 2>, scalar_prefetch = 0 : i64, scratch_operands = 0 : i64, tpu.core_type = #tpu.core_type<tc>, window_params = [{transform_indices = @transform_0, window_bounds = array<i64: 2, 4, 8, 32>}, {pipeline_mode = #tpu.pipeline_mode<synchronous>, transform_indices = @transform_1, window_bounds = array<i64: 1, 4, 8, 1>}, {transform_indices = @transform_2, window_bounds = array<i64: 2, 8, 32>}]} {
    %c0 = arith.constant 0 : index
    %c0_0 = arith.constant 0 : index
    %c0_1 = arith.constant 0 : index
    %c0_2 = arith.constant 0 : index
    %0 = vector.load %arg1[%c0, %c0_0, %c0_1, %c0_2] : memref<2x4x8x32xf32, #tpu.memory_space<vmem>>, vector<2x4x8x32xf32>
    %c0_3 = arith.constant 0 : index
    %c0_4 = arith.constant 0 : index
    %c0_5 = arith.constant 0 : index
    %c0_6 = arith.constant 0 : index
    %1 = vector.load %arg2[%c0_3, %c0_4, %c0_5, %c0_6] : memref<1x4x8x1xf32, #tpu.memory_space<vmem>>, vector<1x4x8x1xf32>
    %cst = arith.constant dense<0.000000e+00> : vector<2x8x32xf32>
    %2 = vector.multi_reduction <add>, %0, %cst [1] : vector<2x4x8x32xf32> to vector<2x8x32xf32>
    %3 = vector.shape_cast %2 : vector<2x8x32xf32> to vector<2x1x8x32xf32>
    %cst_7 = arith.constant 1.250000e-01 : f32
    %4 = vector.broadcast %cst_7 : f32 to vector<2x1x8x32xf32>
    %5 = arith.mulf %3, %4 : vector<2x1x8x32xf32>
    %cst_8 = arith.constant dense<0.000000e+00> : vector<2x4x8xf32>
    %6 = vector.multi_reduction <add>, %0, %cst_8 [3] : vector<2x4x8x32xf32> to vector<2x4x8xf32>
    %7 = vector.shape_cast %6 : vector<2x4x8xf32> to vector<2x4x8x1xf32>
    %8 = vector.broadcast %1 : vector<1x4x8x1xf32> to vector<2x4x8x1xf32>
    %9 = arith.mulf %8, %7 : vector<2x4x8x1xf32>
    %10 = vector.broadcast %5 : vector<2x1x8x32xf32> to vector<2x4x8x32xf32>
    %11 = arith.mulf %0, %10 : vector<2x4x8x32xf32>
    %cst_9 = arith.constant dense<0.000000e+00> : vector<2x4x8xf32>
    %12 = vector.multi_reduction <add>, %11, %cst_9 [3] : vector<2x4x8x32xf32> to vector<2x4x8xf32>
    %13 = vector.shape_cast %12 : vector<2x4x8xf32> to vector<2x4x8x1xf32>
    %14 = arith.addf %13, %9 : vector<2x4x8x1xf32>
    %cst_10 = arith.constant dense<0xFF800000> : vector<2x4x1xf32>
    %15 = vector.multi_reduction <maximumf>, %14, %cst_10 [2] : vector<2x4x8x1xf32> to vector<2x4x1xf32>
    %16 = vector.shape_cast %15 : vector<2x4x1xf32> to vector<2x4x1x1xf32>
    %17 = vector.broadcast %16 : vector<2x4x1x1xf32> to vector<2x4x8x1xf32>
    %18 = arith.subf %14, %17 : vector<2x4x8x1xf32>
    %19 = math.exp %18 : vector<2x4x8x1xf32>
    %cst_11 = arith.constant dense<0.000000e+00> : vector<2x4x1xf32>
    %20 = vector.multi_reduction <add>, %19, %cst_11 [2] : vector<2x4x8x1xf32> to vector<2x4x1xf32>
    %21 = vector.shape_cast %20 : vector<2x4x1xf32> to vector<2x4x1x1xf32>
    %22 = tpu.reciprocal %21 {approx = true} : vector<2x4x1x1xf32> -> vector<2x4x1x1xf32>
    %23 = arith.mulf %21, %22 : vector<2x4x1x1xf32>
    %cst_12 = arith.constant 2.000000e+00 : f32
    %24 = vector.broadcast %cst_12 : f32 to vector<2x4x1x1xf32>
    %25 = arith.subf %24, %23 : vector<2x4x1x1xf32>
    %26 = arith.mulf %22, %25 : vector<2x4x1x1xf32>
    %27 = vector.broadcast %26 : vector<2x4x1x1xf32> to vector<2x4x8x1xf32>
    %28 = arith.mulf %19, %27 : vector<2x4x8x1xf32>
    %29 = vector.broadcast %28 : vector<2x4x8x1xf32> to vector<2x4x8x32xf32>
    %30 = arith.mulf %0, %29 : vector<2x4x8x32xf32>
    %cst_13 = arith.constant dense<0.000000e+00> : vector<2x8x32xf32>
    %31 = vector.multi_reduction <add>, %30, %cst_13 [1] : vector<2x4x8x32xf32> to vector<2x8x32xf32>
    %32 = vector.shape_cast %31 : vector<2x8x32xf32> to vector<2x1x8x32xf32>
    %33 = vector.broadcast %32 : vector<2x1x8x32xf32> to vector<2x4x8x32xf32>
    %34 = arith.mulf %0, %33 : vector<2x4x8x32xf32>
    %cst_14 = arith.constant dense<0.000000e+00> : vector<2x4x8xf32>
    %35 = vector.multi_reduction <add>, %34, %cst_14 [3] : vector<2x4x8x32xf32> to vector<2x4x8xf32>
    %36 = vector.shape_cast %35 : vector<2x4x8xf32> to vector<2x4x8x1xf32>
    %37 = arith.addf %14, %36 : vector<2x4x8x1xf32>
    %38 = arith.addf %37, %9 : vector<2x4x8x1xf32>
    %cst_15 = arith.constant dense<0xFF800000> : vector<2x4x1xf32>
    %39 = vector.multi_reduction <maximumf>, %38, %cst_15 [2] : vector<2x4x8x1xf32> to vector<2x4x1xf32>
    %40 = vector.shape_cast %39 : vector<2x4x1xf32> to vector<2x4x1x1xf32>
    %41 = vector.broadcast %40 : vector<2x4x1x1xf32> to vector<2x4x8x1xf32>
    %42 = arith.subf %38, %41 : vector<2x4x8x1xf32>
    %43 = math.exp %42 : vector<2x4x8x1xf32>
    %cst_16 = arith.constant dense<0.000000e+00> : vector<2x4x1xf32>
    %44 = vector.multi_reduction <add>, %43, %cst_16 [2] : vector<2x4x8x1xf32> to vector<2x4x1xf32>
    %45 = vector.shape_cast %44 : vector<2x4x1xf32> to vector<2x4x1x1xf32>
    %46 = tpu.reciprocal %45 {approx = true} : vector<2x4x1x1xf32> -> vector<2x4x1x1xf32>
    %47 = arith.mulf %45, %46 : vector<2x4x1x1xf32>
    %cst_17 = arith.constant 2.000000e+00 : f32
    %48 = vector.broadcast %cst_17 : f32 to vector<2x4x1x1xf32>
    %49 = arith.subf %48, %47 : vector<2x4x1x1xf32>
    %50 = arith.mulf %46, %49 : vector<2x4x1x1xf32>
    %51 = vector.broadcast %50 : vector<2x4x1x1xf32> to vector<2x4x8x1xf32>
    %52 = arith.mulf %43, %51 : vector<2x4x8x1xf32>
    %53 = vector.broadcast %52 : vector<2x4x8x1xf32> to vector<2x4x8x32xf32>
    %54 = arith.mulf %0, %53 : vector<2x4x8x32xf32>
    %cst_18 = arith.constant dense<0.000000e+00> : vector<2x8x32xf32>
    %55 = vector.multi_reduction <add>, %54, %cst_18 [1] : vector<2x4x8x32xf32> to vector<2x8x32xf32>
    %56 = vector.shape_cast %55 : vector<2x8x32xf32> to vector<2x1x8x32xf32>
    %57 = vector.shape_cast %56 : vector<2x1x8x32xf32> to vector<2x8x32xf32>
    %58 = vector.extract_strided_slice %1 {offsets = [0, 0, 0, 0], sizes = [1, 1, 8, 1], strides = [1, 1, 1, 1]} : vector<1x4x8x1xf32> to vector<1x1x8x1xf32>
    %59 = vector.shape_cast %58 : vector<1x1x8x1xf32> to vector<1x8x1xf32>
    %60 = vector.broadcast %59 : vector<1x8x1xf32> to vector<2x8x32xf32>
    %61 = arith.addf %57, %60 : vector<2x8x32xf32>
    %c0_19 = arith.constant 0 : index
    %c0_20 = arith.constant 0 : index
    %c0_21 = arith.constant 0 : index
    %62 = vector.load %arg3[%c0_19, %c0_20, %c0_21] : memref<2x8x32xf32, #tpu.memory_space<vmem>>, vector<2x8x32xf32>
    tpu.vector_store %arg3[%c0_19, %c0_20, %c0_21], %61 {strides = array<i32>} : memref<2x8x32xf32, #tpu.memory_space<vmem>>, vector<2x8x32xf32>,
    return
  }
  func.func @transform_0(%arg0: i32) -> (i32, i32, i32, i32) {
    %c0_i32 = arith.constant 0 : i32
    %c0_i32_0 = arith.constant 0 : i32
    %c0_i32_1 = arith.constant 0 : i32
    %c0_i32_2 = arith.constant 0 : i32
    return %arg0, %c0_i32, %c0_i32_0, %c0_i32_1 : i32, i32, i32, i32
  }
  func.func @transform_1(%arg0: i32) -> (i32, i32, i32, i32) {
    %c0_i32 = arith.constant 0 : i32
    %c0_i32_0 = arith.constant 0 : i32
    %c0_i32_1 = arith.constant 0 : i32
    %c0_i32_2 = arith.constant 0 : i32
    %c0_i32_3 = arith.constant 0 : i32
    return %c0_i32, %c0_i32_0, %c0_i32_1, %c0_i32_2 : i32, i32, i32, i32
  }
  func.func @transform_2(%arg0: i32) -> (i32, i32, i32) {
    %c0_i32 = arith.constant 0 : i32
    %c0_i32_0 = arith.constant 0 : i32
    %c0_i32_1 = arith.constant 0 : i32
    return %arg0, %c0_i32, %c0_i32_0 : i32, i32, i32
  }
}

</mosaic_0001>

<llo_original>
// kernel: tpu_custom_call.1
$region0: #{tpu_custom_call.1}
  #allocation0 [shape = 'u32[]', space=smem, size = 0x4, offset = 0x4, fixed_abs, tag = 'smem constant byte address 0x4 - core index']
  #allocation1 [shape = 'u32[144,128]{1,0:T(1,128)}', space=vmem, size = 0x12000, scoped, tag = 'internal scratch']
  %s0 = inlined_call_operand.hbm [shape: f32[4,4,8,32], index: 0, kind: input, shape index: {}]
  %s1 = inlined_call_operand.vmem [shape: f32[1,4,8,1], index: 1, kind: input, shape index: {}]
  %s2 = inlined_call_operand.hbm [shape: f32[4,8,32], index: 2, kind: output, shape index: {}]
  %s3 = sld [smem:[#allocation0]]
  $region45: #{tpu_custom_call.1} parent=0
    _
  %s5 = ssub.s32 1, %s3
  %s6 = scalar_select 0, %s5, %s3
  $region1: #{tpu_custom_call.1} parent=0
    #allocation2 [shape = 'u8[65536]{0}', space=vmem, size = 0x10000, scoped, tag = 'input window, operand 0']
    #allocation3 [shape = 's32[2]{0}', space=sflag, size = 0x8, scoped, tag = 'scoped memory for tpu_custom_call.1']
    #allocation4 [shape = 's32[2]{0}', space=sflag, size = 0x8, scoped, tag = 'scoped memory for tpu_custom_call.1']
    #allocation5 [shape = 'u8[16384]{0}', space=vmem, size = 0x4000, scoped, tag = 'output window, operand 0']
    %7 = vsyncpa [#allocation3], 0
    %s8 = scalar_lea.sflag [#allocation3], 1
    %9 = vsyncpa %s8, 0
    %10 = vsyncpa [#allocation4], 0
    %s11 = scalar_lea.sflag [#allocation4], 1
    %12 = vsyncpa %s11, 0
    loop: start=0, step=1, limit=4
    $region2: #{tpu_custom_call.1} parent=1 // loop_pre_header
      _
    $region3: #{tpu_custom_call.1} parent=1 // loop_header
      %s14 = sphi 0, %s18
      %p15 = scmp.ge.s32.totalorder %s14, 4
      %s24 = sphi 0, %s26
      %s27 = sphi 0, %s24
      %s28 = sphi 0, %s27
      %s44 = sphi 0, %s28
      %s48 = sphi 0, %s48
      %s50 = sphi 0, %s48
      %s51 = sphi 0, %s50
      %s65 = sphi 0, %s51
      %s71 = sphi 0, %s73
      %s74 = sphi 0, %s71
      %s75 = sphi 0, %s74
      %s91 = sphi 0, %s75
    $region4: #{tpu_custom_call.1} parent=1 // loop_header_branch
      %17 = sbr.rel (%p15) target = $region8
    $region5: #{tpu_custom_call.1} parent=1 // loop_body
      %s19 = ssub.s32 %s14, 1
      %s20 = ssub.s32 %s14, 2
      %s21 = sadd.s32 %s14, 1
      %s22 = ssub.s32 %s14, %s21
      %p23 = scmp.eq.s32.totalorder %s22, 0
      %s25 = sadd.s32 %s24, 1
      %s26 = scalar_select %p23, %s24, %s25
      %p29 = pneg %p23
      %p30 = scmp.eq.s32.totalorder %s14, 1
      %p31 = por %p29, %p30
      %p32 = scmp.ne.s32.totalorder %s24, %s27
      %p33 = scmp.eq.s32.totalorder %s14, 0
      %p34 = por %p32, %p33
      %p35 = scmp.ne.s32.totalorder %s24, %s27
      %p36 = scmp.eq.s32.totalorder %s19, 1
      %p37 = por %p35, %p36
      %p38 = scmp.ne.s32.totalorder %s27, %s28
      %p39 = scmp.eq.s32.totalorder %s19, 0
      %p40 = por %p38, %p39
      %p41 = scmp.ne.s32.totalorder %s27, %s28
      %p42 = scmp.eq.s32.totalorder %s20, 1
      %p43 = por %p41, %p42
      %p45 = scmp.ne.s32.totalorder %s28, %s44
      %p46 = scmp.eq.s32.totalorder %s20, 0
      %p47 = por %p45, %p46
      %s49 = sadd.s32 %s48, 1
      %p52 = scmp.eq.s32.totalorder %s14, 1
      %p53 = scmp.ne.s32.totalorder %s48, %s50
      %p54 = scmp.eq.s32.totalorder %s14, 0
      %p55 = por %p53, %p54
      %p56 = scmp.ne.s32.totalorder %s48, %s50
      %p57 = scmp.eq.s32.totalorder %s19, 1
      %p58 = por %p56, %p57
      %p59 = scmp.ne.s32.totalorder %s50, %s51
      %p60 = scmp.eq.s32.totalorder %s19, 0
      %p61 = por %p59, %p60
      %p62 = scmp.ne.s32.totalorder %s50, %s51
      %p63 = scmp.eq.s32.totalorder %s20, 1
      %p64 = por %p62, %p63
      %p66 = scmp.ne.s32.totalorder %s51, %s65
      %p67 = scmp.eq.s32.totalorder %s20, 0
      %p68 = por %p66, %p67
      %s69 = ssub.s32 %s14, %s21
      %p70 = scmp.eq.s32.totalorder %s69, 0
      %s72 = sadd.s32 %s71, 1
      %s73 = scalar_select %p70, %s71, %s72
      %p76 = pneg %p70
      %p77 = scmp.eq.s32.totalorder %s14, 1
      %p78 = por %p76, %p77
      %p79 = scmp.ne.s32.totalorder %s71, %s74
      %p80 = scmp.eq.s32.totalorder %s14, 0
      %p81 = por %p79, %p80
      %p82 = scmp.ne.s32.totalorder %s71, %s74
      %p83 = scmp.eq.s32.totalorder %s19, 1
      %p84 = por %p82, %p83
      %p85 = scmp.ne.s32.totalorder %s74, %s75
      %p86 = scmp.eq.s32.totalorder %s19, 0
      %p87 = por %p85, %p86
      %p88 = scmp.ne.s32.totalorder %s74, %s75
      %p89 = scmp.eq.s32.totalorder %s20, 1
      %p90 = por %p88, %p89
      %p92 = scmp.ne.s32.totalorder %s75, %s91
      %p93 = scmp.eq.s32.totalorder %s20, 0
      %p94 = por %p92, %p93
      %p95 = scmp.le.s32.totalorder 1, %s14
      %p96 = scmp.lt.s32.totalorder %s14, 3
      %p97 = pnand %p95, %p96
      %p98 = pneg %p97
      // Predicated region
      $region9: #{tpu_custom_call.1} parent=5 // pred_check
        _
      $region10: #{tpu_custom_call.1} parent=5 // pred_check_branch
        %100 = sbr.rel (%p97) target = $region12
      $region11: #{tpu_custom_call.1} parent=5 // pred_region
        %s101 = ssub.s32 %s14, 1
        // Predicated region
        $region13: #{tpu_custom_call.1} parent=11 // pred_check
          %p102 = pneg %p61
        $region14: #{tpu_custom_call.1} parent=11 // pred_check_branch
          %104 = sbr.rel (%p102) target = $region16
        $region15: #{tpu_custom_call.1} parent=11 // pred_region
          _
        $region16: #{tpu_custom_call.1} parent=11 // pred_fallthru
          _
      $region12: #{tpu_custom_call.1} parent=5 // pred_fallthru
        _
      %p105 = scmp.lt.s32.totalorder %s14, 2
      // Predicated region
      $region17: #{tpu_custom_call.1} parent=5 // pred_check
        %p106 = pneg %p105
      $region18: #{tpu_custom_call.1} parent=5 // pred_check_branch
        %108 = sbr.rel (%p106) target = $region20
      $region19: #{tpu_custom_call.1} parent=5 // pred_region
        // Predicated region
        $region21: #{tpu_custom_call.1} parent=19 // pred_check
          %p109 = pneg %p34
        $region22: #{tpu_custom_call.1} parent=19 // pred_check_branch
          %111 = sbr.rel (%p109) target = $region24
        $region23: #{tpu_custom_call.1} parent=19 // pred_region
          %s112 = sand.u32 %s24, 1
          %s113 = scalar_lea.sflag [#allocation3], %s112
          %s114 = sand.u32 %s24, 1
          %s115 = smul.addr %s114, 64
          %s116 = scalar_lea.vmem [#allocation2], %s115
          %s117 = smul.u32 2, %s14
          %s119 = ssub.s32 1024, 1024
          %120 = vsyncadd %s113, %s119
          %s121 = smul.addr %s117, 4
          %s122 = smul.addr %s121, 128
          %s123 = scalar_lea.hbm %s0, %s122
          %s124 = sshll.u32 %s116, 4
          %s125 = int_to_ptr.vmem [resolvable:$true] %s124
          %130 = dma.hbm_to_vmem [thread:$0]  %s123, 1024, %s125, %s113, 128, 128, 8
        $region24: #{tpu_custom_call.1} parent=19 // pred_fallthru
          _
      $region20: #{tpu_custom_call.1} parent=5 // pred_fallthru
        _
      %p131 = scmp.le.s32.totalorder 1, %s14
      %p132 = scmp.lt.s32.totalorder %s14, 3
      %p133 = pnand %p131, %p132
      %p134 = pneg %p133
      // Predicated region
      $region25: #{tpu_custom_call.1} parent=5 // pred_check
        _
      $region26: #{tpu_custom_call.1} parent=5 // pred_check_branch
        %136 = sbr.rel (%p133) target = $region28
      $region27: #{tpu_custom_call.1} parent=5 // pred_region
        %s137 = ssub.s32 %s14, 1
        %s138 = sand.u32 %s27, 1
        %s139 = scalar_lea.sflag [#allocation3], %s138
        %s140 = sand.u32 %s27, 1
        %s141 = smul.addr %s140, 64
        %s142 = scalar_lea.vmem [#allocation2], %s141
        // Predicated region
        $region29: #{tpu_custom_call.1} parent=27 // pred_check
          %p143 = pneg %p40
        $region30: #{tpu_custom_call.1} parent=27 // pred_check_branch
          %145 = sbr.rel (%p143) target = $region32
        $region31: #{tpu_custom_call.1} parent=27 // pred_region
          %146 = dma.done %s139, 1024
        $region32: #{tpu_custom_call.1} parent=27 // pred_fallthru
          _
        %s147 = sand.u32 %s27, 1
        %s148 = scalar_lea.sflag [#allocation3], %s147
        %s149 = sand.u32 %s27, 1
        %s150 = smul.addr %s149, 64
        %s151 = scalar_lea.vmem [#allocation2], %s150
        %p152 = pneg %p40
        %p153 = pneg %p37
        %p154 = pneg %p61
        %p155 = pneg %p58
        %p156 = pneg %p87
        %p157 = pneg %p84
        %s158 = sand.u32 %s74, 1
        %s159 = scalar_lea.sflag [#allocation4], %s158
        %s160 = sand.u32 %s74, 1
        %s161 = smul.addr %s160, 16
        %s162 = scalar_lea.vmem [#allocation5], %s161
        %s163 = smul.u32 2, %s19
        %s164 = smul.u32 2, %s19
        %v165 = vld [vmem:[%s142] sm:$0xff]
        %v166 = vld [vmem:[%s142 + $0x8] sm:$0xff]
        %v167 = vld [vmem:[%s142 + $0x10] sm:$0xff]
        %v168 = vld [vmem:[%s142 + $0x18] sm:$0xff]
        %v169 = vld [vmem:[%s142 + $0x20] sm:$0xff]
        %v170 = vld [vmem:[%s142 + $0x28] sm:$0xff]
        %v171 = vld [vmem:[%s142 + $0x30] sm:$0xff]
        %v172 = vld [vmem:[%s142 + $0x38] sm:$0xff]
        %v173 = vld [vmem:[%s1] sm:$0xff]
        %v174 = vld [vmem:[%s1 + $0x8] sm:$0xff]
        %v175 = vld [vmem:[%s1 + $0x10] sm:$0xff]
        %v176 = vld [vmem:[%s1 + $0x18] sm:$0xff]
        %vm177 = vcmask 261120
        %v178 = vsel %vm177, %v165, 0.0
        %v179 = vsel %vm177, %v166, 0.0
        %v180 = vadd.f32 %v178, %v179
        %v181 = vsel %vm177, %v167, 0.0
        %v182 = vadd.f32 %v180, %v181
        %v183 = vsel %vm177, %v168, 0.0
        %v184 = vadd.f32 %v182, %v183
        %v185 = vsel %vm177, %v169, 0.0
        %v186 = vsel %vm177, %v170, 0.0
        %v187 = vadd.f32 %v185, %v186
        %v188 = vsel %vm177, %v171, 0.0
        %v189 = vadd.f32 %v187, %v188
        %v190 = vsel %vm177, %v172, 0.0
        %v191 = vadd.f32 %v189, %v190
        %v192 = vmul.f32 %v184, 0.125
        %v193 = vmul.f32 %v191, 0.125
        %194 = vadd.xlane.f32.xlu0 %v178
        %v195 = vpop.xlane.xlu0 %194
        %196 = vadd.xlane.f32.xlu0 %v179
        %v197 = vpop.xlane.xlu0 %196
        %198 = vadd.xlane.f32.xlu0 %v181
        %v199 = vpop.xlane.xlu0 %198
        %200 = vadd.xlane.f32.xlu0 %v183
        %v201 = vpop.xlane.xlu0 %200
        %202 = vadd.xlane.f32.xlu0 %v185
        %v203 = vpop.xlane.xlu0 %202
        %204 = vadd.xlane.f32.xlu0 %v186
        %v205 = vpop.xlane.xlu0 %204
        %206 = vadd.xlane.f32.xlu0 %v188
        %v207 = vpop.xlane.xlu0 %206
        %208 = vadd.xlane.f32.xlu0 %v190
        %v209 = vpop.xlane.xlu0 %208
        %v210 = vmul.f32 %v173, %v195
        %v211 = vmul.f32 %v174, %v197
        %v212 = vmul.f32 %v175, %v199
        %v213 = vmul.f32 %v176, %v201
        %v214 = vmul.f32 %v173, %v203
        %v215 = vmul.f32 %v174, %v205
        %v216 = vmul.f32 %v175, %v207
        %v217 = vmul.f32 %v176, %v209
        %v218 = vmul.f32 %v165, %v192
        %v219 = vmul.f32 %v166, %v192
        %v220 = vmul.f32 %v167, %v192
        %v221 = vmul.f32 %v168, %v192
        %v222 = vmul.f32 %v169, %v193
        %v223 = vmul.f32 %v170, %v193
        %v224 = vmul.f32 %v171, %v193
        %v225 = vmul.f32 %v172, %v193
        %v226 = vsel %vm177, %v218, 0.0
        %227 = vadd.xlane.f32.xlu0 %v226
        %v228 = vpop.xlane.xlu0 %227
        %v229 = vsel %vm177, %v219, 0.0
        %230 = vadd.xlane.f32.xlu0 %v229
        %v231 = vpop.xlane.xlu0 %230
        %v232 = vsel %vm177, %v220, 0.0
        %233 = vadd.xlane.f32.xlu0 %v232
        %v234 = vpop.xlane.xlu0 %233
        %v235 = vsel %vm177, %v221, 0.0
        %236 = vadd.xlane.f32.xlu0 %v235
        %v237 = vpop.xlane.xlu0 %236
        %v238 = vsel %vm177, %v222, 0.0
        %239 = vadd.xlane.f32.xlu0 %v238
        %v240 = vpop.xlane.xlu0 %239
        %v241 = vsel %vm177, %v223, 0.0
        %242 = vadd.xlane.f32.xlu0 %v241
        %v243 = vpop.xlane.xlu0 %242
        %v244 = vsel %vm177, %v224, 0.0
        %245 = vadd.xlane.f32.xlu0 %v244
        %v246 = vpop.xlane.xlu0 %245
        %v247 = vsel %vm177, %v225, 0.0
        %248 = vadd.xlane.f32.xlu0 %v247
        %v249 = vpop.xlane.xlu0 %248
        %v250 = vadd.f32 %v228, %v210
        %v251 = vadd.f32 %v231, %v211
        %v252 = vadd.f32 %v234, %v212
        %v253 = vadd.f32 %v237, %v213
        %v254 = vadd.f32 %v240, %v214
        %v255 = vadd.f32 %v243, %v215
        %v256 = vadd.f32 %v246, %v216
        %v257 = vadd.f32 %v249, %v217
        %vm258 = vcmask 7168
        %v259 = vsel %vm258, %v250, -inf
        %v260 = vrot.slane %v259, 4
        %v261 = vmax.f32 %v259, %v260
        %v262 = vrot.slane %v261, 2
        %v263 = vmax.f32 %v261, %v262
        %v264 = vrot.slane %v263, 1
        %v265 = vmax.f32 %v263, %v264
        %v266 = vsel %vm258, %v251, -inf
        %v267 = vrot.slane %v266, 4
        %v268 = vmax.f32 %v266, %v267
        %v269 = vrot.slane %v268, 2
        %v270 = vmax.f32 %v268, %v269
        %v271 = vrot.slane %v270, 1
        %v272 = vmax.f32 %v270, %v271
        %v273 = vsel %vm258, %v252, -inf
        %v274 = vrot.slane %v273, 4
        %v275 = vmax.f32 %v273, %v274
        %v276 = vrot.slane %v275, 2
        %v277 = vmax.f32 %v275, %v276
        %v278 = vrot.slane %v277, 1
        %v279 = vmax.f32 %v277, %v278
        %v280 = vsel %vm258, %v253, -inf
        %v281 = vrot.slane %v280, 4
        %v282 = vmax.f32 %v280, %v281
        %v283 = vrot.slane %v282, 2
        %v284 = vmax.f32 %v282, %v283
        %v285 = vrot.slane %v284, 1
        %v286 = vmax.f32 %v284, %v285
        %v287 = vsel %vm258, %v254, -inf
        %v288 = vrot.slane %v287, 4
        %v289 = vmax.f32 %v287, %v288
        %v290 = vrot.slane %v289, 2
        %v291 = vmax.f32 %v289, %v290
        %v292 = vrot.slane %v291, 1
        %v293 = vmax.f32 %v291, %v292
        %v294 = vsel %vm258, %v255, -inf
        %v295 = vrot.slane %v294, 4
        %v296 = vmax.f32 %v294, %v295
        %v297 = vrot.slane %v296, 2
        %v298 = vmax.f32 %v296, %v297
        %v299 = vrot.slane %v298, 1
        %v300 = vmax.f32 %v298, %v299
        %v301 = vsel %vm258, %v256, -inf
        %v302 = vrot.slane %v301, 4
        %v303 = vmax.f32 %v301, %v302
        %v304 = vrot.slane %v303, 2
        %v305 = vmax.f32 %v303, %v304
        %v306 = vrot.slane %v305, 1
        %v307 = vmax.f32 %v305, %v306
        %v308 = vsel %vm258, %v257, -inf
        %v309 = vrot.slane %v308, 4
        %v310 = vmax.f32 %v308, %v309
        %v311 = vrot.slane %v310, 2
        %v312 = vmax.f32 %v310, %v311
        %v313 = vrot.slane %v312, 1
        %v314 = vmax.f32 %v312, %v313
        %v315 = vsub.f32 %v250, %v265
        %v316 = vsub.f32 %v251, %v272
        %v317 = vsub.f32 %v252, %v279
        %v318 = vsub.f32 %v253, %v286
        %v319 = vsub.f32 %v254, %v293
        %v320 = vsub.f32 %v255, %v300
        %v321 = vsub.f32 %v256, %v307
        %v322 = vsub.f32 %v257, %v314
        %v323 = vmul.f32 %v315, 1.442695
        %v324 = vpow.pop %v323
        %v325 = vmul.f32 %v316, 1.442695
        %v326 = vpow.pop %v325
        %v327 = vmul.f32 %v317, 1.442695
        %v328 = vpow.pop %v327
        %v329 = vmul.f32 %v318, 1.442695
        %v330 = vpow.pop %v329
        %v331 = vmul.f32 %v319, 1.442695
        %v332 = vpow.pop %v331
        %v333 = vmul.f32 %v320, 1.442695
        %v334 = vpow.pop %v333
        %v335 = vmul.f32 %v321, 1.442695
        %v336 = vpow.pop %v335
        %v337 = vmul.f32 %v322, 1.442695
        %v338 = vpow.pop %v337
        %v339 = vsel %vm258, %v324, 0.0
        %v340 = vrot.slane %v339, 4
        %v341 = vadd.f32 %v339, %v340
        %v342 = vrot.slane %v341, 2
        %v343 = vadd.f32 %v341, %v342
        %v344 = vrot.slane %v343, 1
        %v345 = vadd.f32 %v343, %v344
        %v346 = vsel %vm258, %v326, 0.0
        %v347 = vrot.slane %v346, 4
        %v348 = vadd.f32 %v346, %v347
        %v349 = vrot.slane %v348, 2
        %v350 = vadd.f32 %v348, %v349
        %v351 = vrot.slane %v350, 1
        %v352 = vadd.f32 %v350, %v351
        %v353 = vsel %vm258, %v328, 0.0
        %v354 = vrot.slane %v353, 4
        %v355 = vadd.f32 %v353, %v354
        %v356 = vrot.slane %v355, 2
        %v357 = vadd.f32 %v355, %v356
        %v358 = vrot.slane %v357, 1
        %v359 = vadd.f32 %v357, %v358
        %v360 = vsel %vm258, %v330, 0.0
        %v361 = vrot.slane %v360, 4
        %v362 = vadd.f32 %v360, %v361
        %v363 = vrot.slane %v362, 2
        %v364 = vadd.f32 %v362, %v363
        %v365 = vrot.slane %v364, 1
        %v366 = vadd.f32 %v364, %v365
        %v367 = vsel %vm258, %v332, 0.0
        %v368 = vrot.slane %v367, 4
        %v369 = vadd.f32 %v367, %v368
        %v370 = vrot.slane %v369, 2
        %v371 = vadd.f32 %v369, %v370
        %v372 = vrot.slane %v371, 1
        %v373 = vadd.f32 %v371, %v372
        %v374 = vsel %vm258, %v334, 0.0
        %v375 = vrot.slane %v374, 4
        %v376 = vadd.f32 %v374, %v375
        %v377 = vrot.slane %v376, 2
        %v378 = vadd.f32 %v376, %v377
        %v379 = vrot.slane %v378, 1
        %v380 = vadd.f32 %v378, %v379
        %v381 = vsel %vm258, %v336, 0.0
        %v382 = vrot.slane %v381, 4
        %v383 = vadd.f32 %v381, %v382
        %v384 = vrot.slane %v383, 2
        %v385 = vadd.f32 %v383, %v384
        %v386 = vrot.slane %v385, 1
        %v387 = vadd.f32 %v385, %v386
        %v388 = vsel %vm258, %v338, 0.0
        %v389 = vrot.slane %v388, 4
        %v390 = vadd.f32 %v388, %v389
        %v391 = vrot.slane %v390, 2
        %v392 = vadd.f32 %v390, %v391
        %v393 = vrot.slane %v392, 1
        %v394 = vadd.f32 %v392, %v393
        %v395 = vrcp.pop %v345
        %v396 = vrcp.pop %v352
        %v397 = vrcp.pop %v359
        %v398 = vrcp.pop %v366
        %v399 = vrcp.pop %v373
        %v400 = vrcp.pop %v380
        %v401 = vrcp.pop %v387
        %v402 = vrcp.pop %v394
        %v403 = vmul.f32 %v345, %v395
        %v404 = vmul.f32 %v352, %v396
        %v405 = vmul.f32 %v359, %v397
        %v406 = vmul.f32 %v366, %v398
        %v407 = vmul.f32 %v373, %v399
        %v408 = vmul.f32 %v380, %v400
        %v409 = vmul.f32 %v387, %v401
        %v410 = vmul.f32 %v394, %v402
        %v411 = vsub.f32 2.0, %v403
        %v412 = vsub.f32 2.0, %v404
        %v413 = vsub.f32 2.0, %v405
        %v414 = vsub.f32 2.0, %v406
        %v415 = vsub.f32 2.0, %v407
        %v416 = vsub.f32 2.0, %v408
        %v417 = vsub.f32 2.0, %v409
        %v418 = vsub.f32 2.0, %v410
        %v419 = vmul.f32 %v395, %v411
        %v420 = vmul.f32 %v396, %v412
        %v421 = vmul.f32 %v397, %v413
        %v422 = vmul.f32 %v398, %v414
        %v423 = vmul.f32 %v399, %v415
        %v424 = vmul.f32 %v400, %v416
        %v425 = vmul.f32 %v401, %v417
        %v426 = vmul.f32 %v402, %v418
        %v427 = vmul.f32 %v324, %v419
        %v428 = vmul.f32 %v326, %v420
        %v429 = vmul.f32 %v328, %v421
        %v430 = vmul.f32 %v330, %v422
        %v431 = vmul.f32 %v332, %v423
        %v432 = vmul.f32 %v334, %v424
        %v433 = vmul.f32 %v336, %v425
        %v434 = vmul.f32 %v338, %v426
        %436 = vset.pattern.permute.xlu0 0
        %437 = vperm.xlu0 %436, %v427
        %v438 = vpop.permute.xlu0 %437
        %441 = vset.pattern.permute.xlu0 0
        %442 = vperm.xlu0 %441, %v428
        %v443 = vpop.permute.xlu0 %442
        %446 = vset.pattern.permute.xlu0 0
        %447 = vperm.xlu0 %446, %v429
        %v448 = vpop.permute.xlu0 %447
        %451 = vset.pattern.permute.xlu0 0
        %452 = vperm.xlu0 %451, %v430
        %v453 = vpop.permute.xlu0 %452
        %456 = vset.pattern.permute.xlu0 0
        %457 = vperm.xlu0 %456, %v431
        %v458 = vpop.permute.xlu0 %457
        %461 = vset.pattern.permute.xlu0 0
        %462 = vperm.xlu0 %461, %v432
        %v463 = vpop.permute.xlu0 %462
        %466 = vset.pattern.permute.xlu0 0
        %467 = vperm.xlu0 %466, %v433
        %v468 = vpop.permute.xlu0 %467
        %471 = vset.pattern.permute.xlu0 0
        %472 = vperm.xlu0 %471, %v434
        %v473 = vpop.permute.xlu0 %472
        %v475 = vmul.f32 %v165, %v438
        %v476 = vmul.f32 %v166, %v443
        %v477 = vmul.f32 %v167, %v448
        %v478 = vmul.f32 %v168, %v453
        %v479 = vmul.f32 %v169, %v458
        %v480 = vmul.f32 %v170, %v463
        %v481 = vmul.f32 %v171, %v468
        %v482 = vmul.f32 %v172, %v473
        %v483 = vsel %vm177, %v475, 0.0
        %v484 = vsel %vm177, %v476, 0.0
        %v485 = vadd.f32 %v483, %v484
        %v486 = vsel %vm177, %v477, 0.0
        %v487 = vadd.f32 %v485, %v486
        %v488 = vsel %vm177, %v478, 0.0
        %v489 = vadd.f32 %v487, %v488
        %v490 = vsel %vm177, %v479, 0.0
        %v491 = vsel %vm177, %v480, 0.0
        %v492 = vadd.f32 %v490, %v491
        %v493 = vsel %vm177, %v481, 0.0
        %v494 = vadd.f32 %v492, %v493
        %v495 = vsel %vm177, %v482, 0.0
        %v496 = vadd.f32 %v494, %v495
        %v497 = vmul.f32 %v165, %v489
        %v498 = vmul.f32 %v166, %v489
        %v499 = vmul.f32 %v167, %v489
        %v500 = vmul.f32 %v168, %v489
        %v501 = vmul.f32 %v169, %v496
        %v502 = vmul.f32 %v170, %v496
        %v503 = vmul.f32 %v171, %v496
        %v504 = vmul.f32 %v172, %v496
        %v505 = vsel %vm177, %v497, 0.0
        %506 = vadd.xlane.f32.xlu0 %v505
        %v507 = vpop.xlane.xlu0 %506
        %v508 = vsel %vm177, %v498, 0.0
        %509 = vadd.xlane.f32.xlu0 %v508
        %v510 = vpop.xlane.xlu0 %509
        %v511 = vsel %vm177, %v499, 0.0
        %512 = vadd.xlane.f32.xlu0 %v511
        %v513 = vpop.xlane.xlu0 %512
        %v514 = vsel %vm177, %v500, 0.0
        %515 = vadd.xlane.f32.xlu0 %v514
        %v516 = vpop.xlane.xlu0 %515
        %v517 = vsel %vm177, %v501, 0.0
        %518 = vadd.xlane.f32.xlu0 %v517
        %v519 = vpop.xlane.xlu0 %518
        %v520 = vsel %vm177, %v502, 0.0
        %521 = vadd.xlane.f32.xlu0 %v520
        %v522 = vpop.xlane.xlu0 %521
        %v523 = vsel %vm177, %v503, 0.0
        %524 = vadd.xlane.f32.xlu0 %v523
        %v525 = vpop.xlane.xlu0 %524
        %v526 = vsel %vm177, %v504, 0.0
        %527 = vadd.xlane.f32.xlu0 %v526
        %v528 = vpop.xlane.xlu0 %527
        %v529 = vadd.f32 %v250, %v507
        %v530 = vadd.f32 %v251, %v510
        %v531 = vadd.f32 %v252, %v513
        %v532 = vadd.f32 %v253, %v516
        %v533 = vadd.f32 %v254, %v519
        %v534 = vadd.f32 %v255, %v522
        %v535 = vadd.f32 %v256, %v525
        %v536 = vadd.f32 %v257, %v528
        %v537 = vadd.f32 %v529, %v210
        %v538 = vadd.f32 %v530, %v211
        %v539 = vadd.f32 %v531, %v212
        %v540 = vadd.f32 %v532, %v213
        %v541 = vadd.f32 %v533, %v214
        %v542 = vadd.f32 %v534, %v215
        %v543 = vadd.f32 %v535, %v216
        %v544 = vadd.f32 %v536, %v217
        %v545 = vsel %vm258, %v537, -inf
        %v546 = vrot.slane %v545, 4
        %v547 = vmax.f32 %v545, %v546
        %v548 = vrot.slane %v547, 2
        %v549 = vmax.f32 %v547, %v548
        %v550 = vrot.slane %v549, 1
        %v551 = vmax.f32 %v549, %v550
        %v552 = vsel %vm258, %v538, -inf
        %v553 = vrot.slane %v552, 4
        %v554 = vmax.f32 %v552, %v553
        %v555 = vrot.slane %v554, 2
        %v556 = vmax.f32 %v554, %v555
        %v557 = vrot.slane %v556, 1
        %v558 = vmax.f32 %v556, %v557
        %v559 = vsel %vm258, %v539, -inf
        %v560 = vrot.slane %v559, 4
        %v561 = vmax.f32 %v559, %v560
        %v562 = vrot.slane %v561, 2
        %v563 = vmax.f32 %v561, %v562
        %v564 = vrot.slane %v563, 1
        %v565 = vmax.f32 %v563, %v564
        %v566 = vsel %vm258, %v540, -inf
        %v567 = vrot.slane %v566, 4
        %v568 = vmax.f32 %v566, %v567
        %v569 = vrot.slane %v568, 2
        %v570 = vmax.f32 %v568, %v569
        %v571 = vrot.slane %v570, 1
        %v572 = vmax.f32 %v570, %v571
        %v573 = vsel %vm258, %v541, -inf
        %v574 = vrot.slane %v573, 4
        %v575 = vmax.f32 %v573, %v574
        %v576 = vrot.slane %v575, 2
        %v577 = vmax.f32 %v575, %v576
        %v578 = vrot.slane %v577, 1
        %v579 = vmax.f32 %v577, %v578
        %v580 = vsel %vm258, %v542, -inf
        %v581 = vrot.slane %v580, 4
        %v582 = vmax.f32 %v580, %v581
        %v583 = vrot.slane %v582, 2
        %v584 = vmax.f32 %v582, %v583
        %v585 = vrot.slane %v584, 1
        %v586 = vmax.f32 %v584, %v585
        %v587 = vsel %vm258, %v543, -inf
        %v588 = vrot.slane %v587, 4
        %v589 = vmax.f32 %v587, %v588
        %v590 = vrot.slane %v589, 2
        %v591 = vmax.f32 %v589, %v590
        %v592 = vrot.slane %v591, 1
        %v593 = vmax.f32 %v591, %v592
        %v594 = vsel %vm258, %v544, -inf
        %v595 = vrot.slane %v594, 4
        %v596 = vmax.f32 %v594, %v595
        %v597 = vrot.slane %v596, 2
        %v598 = vmax.f32 %v596, %v597
        %v599 = vrot.slane %v598, 1
        %v600 = vmax.f32 %v598, %v599
        %v601 = vsub.f32 %v537, %v551
        %v602 = vsub.f32 %v538, %v558
        %v603 = vsub.f32 %v539, %v565
        %v604 = vsub.f32 %v540, %v572
        %v605 = vsub.f32 %v541, %v579
        %v606 = vsub.f32 %v542, %v586
        %v607 = vsub.f32 %v543, %v593
        %v608 = vsub.f32 %v544, %v600
        %v609 = vmul.f32 %v601, 1.442695
        %v610 = vpow.pop %v609
        %v611 = vmul.f32 %v602, 1.442695
        %v612 = vpow.pop %v611
        %v613 = vmul.f32 %v603, 1.442695
        %v614 = vpow.pop %v613
        %v615 = vmul.f32 %v604, 1.442695
        %v616 = vpow.pop %v615
        %v617 = vmul.f32 %v605, 1.442695
        %v618 = vpow.pop %v617
        %v619 = vmul.f32 %v606, 1.442695
        %v620 = vpow.pop %v619
        %v621 = vmul.f32 %v607, 1.442695
        %v622 = vpow.pop %v621
        %v623 = vmul.f32 %v608, 1.442695
        %v624 = vpow.pop %v623
        %v625 = vsel %vm258, %v610, 0.0
        %v626 = vrot.slane %v625, 4
        %v627 = vadd.f32 %v625, %v626
        %v628 = vrot.slane %v627, 2
        %v629 = vadd.f32 %v627, %v628
        %v630 = vrot.slane %v629, 1
        %v631 = vadd.f32 %v629, %v630
        %v632 = vsel %vm258, %v612, 0.0
        %v633 = vrot.slane %v632, 4
        %v634 = vadd.f32 %v632, %v633
        %v635 = vrot.slane %v634, 2
        %v636 = vadd.f32 %v634, %v635
        %v637 = vrot.slane %v636, 1
        %v638 = vadd.f32 %v636, %v637
        %v639 = vsel %vm258, %v614, 0.0
        %v640 = vrot.slane %v639, 4
        %v641 = vadd.f32 %v639, %v640
        %v642 = vrot.slane %v641, 2
        %v643 = vadd.f32 %v641, %v642
        %v644 = vrot.slane %v643, 1
        %v645 = vadd.f32 %v643, %v644
        %v646 = vsel %vm258, %v616, 0.0
        %v647 = vrot.slane %v646, 4
        %v648 = vadd.f32 %v646, %v647
        %v649 = vrot.slane %v648, 2
        %v650 = vadd.f32 %v648, %v649
        %v651 = vrot.slane %v650, 1
        %v652 = vadd.f32 %v650, %v651
        %v653 = vsel %vm258, %v618, 0.0
        %v654 = vrot.slane %v653, 4
        %v655 = vadd.f32 %v653, %v654
        %v656 = vrot.slane %v655, 2
        %v657 = vadd.f32 %v655, %v656
        %v658 = vrot.slane %v657, 1
        %v659 = vadd.f32 %v657, %v658
        %v660 = vsel %vm258, %v620, 0.0
        %v661 = vrot.slane %v660, 4
        %v662 = vadd.f32 %v660, %v661
        %v663 = vrot.slane %v662, 2
        %v664 = vadd.f32 %v662, %v663
        %v665 = vrot.slane %v664, 1
        %v666 = vadd.f32 %v664, %v665
        %v667 = vsel %vm258, %v622, 0.0
        %v668 = vrot.slane %v667, 4
        %v669 = vadd.f32 %v667, %v668
        %v670 = vrot.slane %v669, 2
        %v671 = vadd.f32 %v669, %v670
        %v672 = vrot.slane %v671, 1
        %v673 = vadd.f32 %v671, %v672
        %v674 = vsel %vm258, %v624, 0.0
        %v675 = vrot.slane %v674, 4
        %v676 = vadd.f32 %v674, %v675
        %v677 = vrot.slane %v676, 2
        %v678 = vadd.f32 %v676, %v677
        %v679 = vrot.slane %v678, 1
        %v680 = vadd.f32 %v678, %v679
        %v681 = vrcp.pop %v631
        %v682 = vrcp.pop %v638
        %v683 = vrcp.pop %v645
        %v684 = vrcp.pop %v652
        %v685 = vrcp.pop %v659
        %v686 = vrcp.pop %v666
        %v687 = vrcp.pop %v673
        %v688 = vrcp.pop %v680
        %v689 = vmul.f32 %v631, %v681
        %v690 = vmul.f32 %v638, %v682
        %v691 = vmul.f32 %v645, %v683
        %v692 = vmul.f32 %v652, %v684
        %v693 = vmul.f32 %v659, %v685
        %v694 = vmul.f32 %v666, %v686
        %v695 = vmul.f32 %v673, %v687
        %v696 = vmul.f32 %v680, %v688
        %v697 = vsub.f32 2.0, %v689
        %v698 = vsub.f32 2.0, %v690
        %v699 = vsub.f32 2.0, %v691
        %v700 = vsub.f32 2.0, %v692
        %v701 = vsub.f32 2.0, %v693
        %v702 = vsub.f32 2.0, %v694
        %v703 = vsub.f32 2.0, %v695
        %v704 = vsub.f32 2.0, %v696
        %v705 = vmul.f32 %v681, %v697
        %v706 = vmul.f32 %v682, %v698
        %v707 = vmul.f32 %v683, %v699
        %v708 = vmul.f32 %v684, %v700
        %v709 = vmul.f32 %v685, %v701
        %v710 = vmul.f32 %v686, %v702
        %v711 = vmul.f32 %v687, %v703
        %v712 = vmul.f32 %v688, %v704
        %v713 = vmul.f32 %v610, %v705
        %v714 = vmul.f32 %v612, %v706
        %v715 = vmul.f32 %v614, %v707
        %v716 = vmul.f32 %v616, %v708
        %v717 = vmul.f32 %v618, %v709
        %v718 = vmul.f32 %v620, %v710
        %v719 = vmul.f32 %v622, %v711
        %v720 = vmul.f32 %v624, %v712
        %722 = vset.pattern.permute.xlu0 0
        %723 = vperm.xlu0 %722, %v713
        %v724 = vpop.permute.xlu0 %723
        %727 = vset.pattern.permute.xlu0 0
        %728 = vperm.xlu0 %727, %v714
        %v729 = vpop.permute.xlu0 %728
        %732 = vset.pattern.permute.xlu0 0
        %733 = vperm.xlu0 %732, %v715
        %v734 = vpop.permute.xlu0 %733
        %737 = vset.pattern.permute.xlu0 0
        %738 = vperm.xlu0 %737, %v716
        %v739 = vpop.permute.xlu0 %738
        %742 = vset.pattern.permute.xlu0 0
        %743 = vperm.xlu0 %742, %v717
        %v744 = vpop.permute.xlu0 %743
        %747 = vset.pattern.permute.xlu0 0
        %748 = vperm.xlu0 %747, %v718
        %v749 = vpop.permute.xlu0 %748
        %752 = vset.pattern.permute.xlu0 0
        %753 = vperm.xlu0 %752, %v719
        %v754 = vpop.permute.xlu0 %753
        %757 = vset.pattern.permute.xlu0 0
        %758 = vperm.xlu0 %757, %v720
        %v759 = vpop.permute.xlu0 %758
        %v761 = vmul.f32 %v165, %v724
        %v762 = vmul.f32 %v166, %v729
        %v763 = vmul.f32 %v167, %v734
        %v764 = vmul.f32 %v168, %v739
        %v765 = vmul.f32 %v169, %v744
        %v766 = vmul.f32 %v170, %v749
        %v767 = vmul.f32 %v171, %v754
        %v768 = vmul.f32 %v172, %v759
        %v769 = vsel %vm177, %v761, 0.0
        %v770 = vsel %vm177, %v762, 0.0
        %v771 = vadd.f32 %v769, %v770
        %v772 = vsel %vm177, %v763, 0.0
        %v773 = vadd.f32 %v771, %v772
        %v774 = vsel %vm177, %v764, 0.0
        %v775 = vadd.f32 %v773, %v774
        %v776 = vsel %vm177, %v765, 0.0
        %v777 = vsel %vm177, %v766, 0.0
        %v778 = vadd.f32 %v776, %v777
        %v779 = vsel %vm177, %v767, 0.0
        %v780 = vadd.f32 %v778, %v779
        %v781 = vsel %vm177, %v768, 0.0
        %v782 = vadd.f32 %v780, %v781
        %784 = vset.pattern.permute.xlu0 0
        %785 = vperm.xlu0 %784, %v173
        %v786 = vpop.permute.xlu0 %785
        %v788 = vadd.f32 %v775, %v786
        %v789 = vadd.f32 %v782, %v786
        %790 = vst.msk [vmem:[%s162] sm:$0xff] %vm177, %v788
        %791 = vst.msk [vmem:[%s162 + $0x8] sm:$0xff] %vm177, %v789
        %s792 = sand.u32 %s74, 1
        %s793 = scalar_lea.sflag [#allocation4], %s792
        %s794 = sand.u32 %s74, 1
        %s795 = smul.addr %s794, 16
        %s796 = scalar_lea.vmem [#allocation5], %s795
        // Predicated region
        $region33: #{tpu_custom_call.1} parent=27 // pred_check
          %p797 = pneg %p84
        $region34: #{tpu_custom_call.1} parent=27 // pred_check_branch
          %799 = sbr.rel (%p797) target = $region36
        $region35: #{tpu_custom_call.1} parent=27 // pred_region
          %s800 = smul.u32 2, %s19
          %s802 = ssub.s32 256, 256
          %803 = vsyncadd %s793, %s802
          %s804 = smul.addr %s800, 128
          %s805 = scalar_lea.hbm %s2, %s804
          %s806 = sshll.u32 %s796, 4
          %s807 = int_to_ptr.vmem [resolvable:$true] %s806
          %812 = dma.vmem_to_hbm [thread:$0]  %s807, 256, %s805, %s793, 128, 128, 8
        $region36: #{tpu_custom_call.1} parent=27 // pred_fallthru
          _
      $region28: #{tpu_custom_call.1} parent=5 // pred_fallthru
        _
      %p813 = scmp.le.s32.totalorder 2, %s14
      // Predicated region
      $region37: #{tpu_custom_call.1} parent=5 // pred_check
        %p814 = pneg %p813
      $region38: #{tpu_custom_call.1} parent=5 // pred_check_branch
        %816 = sbr.rel (%p814) target = $region40
      $region39: #{tpu_custom_call.1} parent=5 // pred_region
        %s817 = ssub.s32 %s14, 2
        // Predicated region
        $region41: #{tpu_custom_call.1} parent=39 // pred_check
          %p818 = pneg %p90
        $region42: #{tpu_custom_call.1} parent=39 // pred_check_branch
          %820 = sbr.rel (%p818) target = $region44
        $region43: #{tpu_custom_call.1} parent=39 // pred_region
          %s821 = sand.u32 %s75, 1
          %s822 = scalar_lea.sflag [#allocation4], %s821
          %s823 = sand.u32 %s75, 1
          %s824 = smul.addr %s823, 16
          %s825 = scalar_lea.vmem [#allocation5], %s824
          %826 = dma.done %s822, 256
        $region44: #{tpu_custom_call.1} parent=39 // pred_fallthru
          _
      $region40: #{tpu_custom_call.1} parent=5 // pred_fallthru
        _
    $region6: #{tpu_custom_call.1} parent=1 // loop_footer
      %s18 = sadd.s32 1, %s14
    $region7: #{tpu_custom_call.1} parent=1 // loop_footer_branch
      %13 = sbr.rel target = $region3
    $region8: #{tpu_custom_call.1} parent=1 // loop_exit
      _
    %827 = vsyncpa [#allocation3], 1
    %s828 = scalar_lea.sflag [#allocation3], 1
    %829 = vsyncpa %s828, 1
    %830 = vsyncpa [#allocation4], 1
    %s831 = scalar_lea.sflag [#allocation4], 1
    %832 = vsyncpa %s831, 1

</llo_original>
